<compile_context>
chip_gen: v6e
topology: v6e:2x2x1
jax: 0.10.0
libtpu: 0.0.40
codegen_flags: <defaults>
</compile_context>

<pallas_src>
import numpy as np
import jax
import jax.numpy as jnp
from jax.experimental import pallas as pl
from jax.experimental.pallas import tpu as pltpu

# ----- small shapes consistent with the module -----
BATCH = 2
INPUT_DIM = 4      # F (args.input_dim)
NUM_NODES = 16     # V (args.num_nodes)
SEQ_LEN = 8        # T (args.seq_len)
DGRAPHS = 32       # args.dgraphs
CIN = INPUT_DIM * SEQ_LEN   # in_channels of SpectralConv1d.Lin


def _atan(x):
    """float32 arctan (Cephes-style range reduction + minimax poly).

    Internal divides use pl.reciprocal(approx=True) (EUP slot); the saturating range
    reduction makes the ~2^-12 relative error harmless here.
    """
    ax = jnp.abs(x)
    t3 = ax > 2.414213562373095      # tan(3*pi/8)
    t1 = ax > 0.41421356237309503    # tan(pi/8)
    y0 = jnp.where(t3, jnp.float32(np.pi / 2),
                   jnp.where(t1, jnp.float32(np.pi / 4), jnp.float32(0.0)))
    xr = jnp.where(t3, -pl.reciprocal(ax, approx=True),
                   jnp.where(t1, (ax - 1.0) * pl.reciprocal(ax + 1.0, approx=True), ax))
    z = xr * xr
    p = (((8.05374449538e-2 * z - 1.38776856032e-1) * z
          + 1.99777106478e-1) * z - 3.33329491539e-1)
    y = y0 + p * z * xr + xr
    return jnp.where(x < 0, -y, y)


def instant_graph_kernel(x_ref, mcat_ref, ab_ref, wcat_ref, out_ref):
    V = out_ref.shape[0]             # num_nodes
    BV = ab_ref.shape[1]             # batch * num_nodes
    B = BV // V                      # static python int
    D = mcat_ref.shape[1] // 2       # dgraphs

    # --- SpectralConv1d: one fused MXU dot gives [real | img], biases folded via ones col ---
    #   x_aug (BV, C+1) bf16  @  M_cat (C+1, 2D) bf16  ->  (BV, 2D) f32
    ri = jnp.dot(x_ref[...], mcat_ref[...], preferred_element_type=jnp.float32)
    real = ri[:, :D]
    img = ri[:, D:]

    # --- torch.fft.irfft(view_as_complex(...), n=V, dim=1): two dots along the node axis
    #     against batch-block-diagonal inverse-real-DFT matrices (no [real; img] restack) ---
    iffted = (jnp.dot(ab_ref[0], real.astype(jnp.bfloat16),
                      preferred_element_type=jnp.float32)
              + jnp.dot(ab_ref[1], img.astype(jnp.bfloat16),
                        preferred_element_type=jnp.float32))          # (BV, D) f32

    Am = jnp.sqrt(real * real + img * img)
    S = _atan(real / (img + 1e-4))          # exact f32 divide for the atan argument

    # --- fc1(iffted) + fc2(Am) + fc3(S) + (b1+b2+b3) as ONE dot: K = 3D+1 (ones column) ---
    ones_col = jnp.ones((BV, 1), jnp.float32)
    fc_lhs = jnp.concatenate([iffted, Am, S, ones_col], axis=1).astype(jnp.bfloat16)
    pre = jnp.dot(fc_lhs, wcat_ref[...], preferred_element_type=jnp.float32)   # (BV, V)
    mid = jax.nn.sigmoid(pre * (1.0 / 3.0))

    # --- batch mean (sum over B row-blocks) + final sigmoid ---
    acc = mid[0:V, :]
    for b in range(1, B):
        acc = acc + mid[b * V:(b + 1) * V, :]
    out_ref[...] = jax.nn.sigmoid(acc * (1.0 / B))


def instant_graph_pallas(x_aug, m_cat, ab2, w_cat, num_nodes):
    vmem = pltpu.MemorySpace.VMEM
    return pl.pallas_call(
        instant_graph_kernel,
        out_shape=jax.ShapeDtypeStruct((num_nodes, num_nodes), jnp.float32),
        in_specs=[pl.BlockSpec(memory_space=vmem)] * 4,
        out_specs=pl.BlockSpec(memory_space=vmem),
    )(x_aug, m_cat, ab2, w_cat)


# ----------------- host-side glue: fused matrices, params, reference -----------------
def irfft_matrices_f64(n):
    """out[m] = sum_k A[m,k]*Re(z[k]) + B[m,k]*Im(z[k]); z trimmed to first n//2+1 freqs
    (numpy/torch irfft semantics: imag parts of DC and Nyquist are ignored)."""
    m = np.arange(n)
    A = np.zeros((n, n), np.float64)
    Bm = np.zeros((n, n), np.float64)
    A[:, 0] = 1.0 / n
    for kk in range(1, (n + 1) // 2):
        ang = 2.0 * np.pi * kk * m / n
        A[:, kk] = 2.0 * np.cos(ang) / n
        Bm[:, kk] = -2.0 * np.sin(ang) / n
    if n % 2 == 0:
        A[:, n // 2] = np.cos(np.pi * m) / n   # (-1)^m / n, Nyquist
    return A, Bm


def build_fused_params(w_lin, b_lin, w1, b1, w2, b2, w3, b3, B, V, C):
    # DFT matrices in float64, folded into the Lin weight; real/img halves concatenated
    # along N and the Lin bias appended as the last row (matches the ones column on x).
    n = np.arange(C)
    ang = 2.0 * np.pi * np.outer(n, n) / C
    cos64, sin64 = np.cos(ang), np.sin(ang)
    w64 = np.asarray(w_lin, np.float64)
    m_real = cos64 @ w64            # x @ m_real == Re(FFT(x)) @ W_lin
    m_img = -(sin64 @ w64)          # x @ m_img  == Im(FFT(x)) @ W_lin
    b64 = np.asarray(b_lin, np.float64).reshape(1, -1)
    m_cat = np.concatenate(
        [np.concatenate([m_real, m_img], axis=1),
         np.concatenate([b64, b64], axis=1)], axis=0)                  # (C+1, 2D)

    # irfft along nodes, batch-block-diagonal; real- and imag-part matrices stacked.
    # TODO(synk): at production batch sizes replace this kron form with a batched
    # contraction (the block-diagonal matrix is O((B*V)^2) with (B-1)/B zeros).
    A64, B64 = irfft_matrices_f64(V)
    ab2 = np.stack([np.kron(np.eye(B), A64),
                    np.kron(np.eye(B), B64)], axis=0)                  # (2, B*V, B*V)

    # fc1/fc2/fc3 fused along K, summed bias appended as the last row (ones column on LHS).
    w_cat = np.concatenate([np.asarray(w1, np.float64),
                            np.asarray(w2, np.float64),
                            np.asarray(w3, np.float64),
                            np.asarray(b1 + b2 + b3, np.float64).reshape(1, -1)],
                           axis=0)                                     # (3D+1, V)

    return (jnp.asarray(m_cat, dtype=jnp.bfloat16),
            jnp.asarray(ab2, dtype=jnp.bfloat16),
            jnp.asarray(w_cat, dtype=jnp.bfloat16))


def linear_params(key, fan_in, fan_out):
    kw, kb = jax.random.split(key)
    bound = 1.0 / np.sqrt(fan_in)
    w = jax.random.uniform(kw, (fan_in, fan_out), jnp.float32, -bound, bound)
    b = jax.random.uniform(kb, (1, fan_out), jnp.float32, -bound, bound)
    return w, b


def reference_forward(x, w_lin, b_lin, w1, b1, w2, b2, w3, b3):
    """Plain-JAX replica of the PyTorch module (real FFT / irfft ops, unfused weights)."""
    B, Fd, V, T = x.shape
    xp = jnp.transpose(x, (0, 2, 3, 1)).reshape(B, V, T * Fd)
    ff = jnp.fft.fft(xp, axis=-1)
    real = jnp.real(ff).astype(jnp.float32) @ w_lin + b_lin
    img = jnp.imag(ff).astype(jnp.float32) @ w_lin + b_lin
    iffted = jnp.fft.irfft(jax.lax.complex(real, img), n=V, axis=1)
    Am = jnp.sqrt(real * real + img * img)
    S = jnp.arctan(real / (img + 1e-4))
    mid = jax.nn.sigmoid((iffted @ w1 + b1 + Am @ w2 + b2 + S @ w3 + b3) / 3.0)
    return jax.nn.sigmoid(jnp.sum(mid, axis=0) / B)


if __name__ == "__main__":
    key = jax.random.PRNGKey(0)
    ks = jax.random.split(key, 5)

    # deterministic parameter init (shapes from the module's __init__)
    w_lin, b_lin = linear_params(ks[0], CIN, DGRAPHS)       # SpectralConv1d.Lin
    w1, b1 = linear_params(ks[1], DGRAPHS, NUM_NODES)       # fc1
    w2, b2 = linear_params(ks[2], DGRAPHS, NUM_NODES)       # fc2
    w3, b3 = linear_params(ks[3], DGRAPHS, NUM_NODES)       # fc3

    x = jax.random.normal(ks[4], (BATCH, INPUT_DIM, NUM_NODES, SEQ_LEN), jnp.float32)

    m_cat, ab2, w_cat = build_fused_params(
        w_lin, b_lin, w1, b1, w2, b2, w3, b3, BATCH, NUM_NODES, CIN)

    # glue: same permute/reshape as torch, plus the ones column for the folded Lin bias
    x2d = jnp.transpose(x, (0, 2, 3, 1)).reshape(BATCH * NUM_NODES, CIN)
    x_aug = jnp.concatenate(
        [x2d, jnp.ones((BATCH * NUM_NODES, 1), jnp.float32)], axis=1).astype(jnp.bfloat16)

    graph = instant_graph_pallas(x_aug, m_cat, ab2, w_cat, NUM_NODES)
    graph = jax.block_until_ready(graph)

    # High-fidelity baseline (kernel itself uses bf16 MXU operands with f32 accumulation).
    with jax.default_matmul_precision("highest"):
        ref = jax.block_until_ready(
            reference_forward(x, w_lin, b_lin, w1, b1, w2, b2, w3, b3))

    assert graph.shape == (NUM_NODES, NUM_NODES)
    if not np.allclose(np.asarray(graph), np.asarray(ref), rtol=2e-3, atol=2e-3):
        raise AssertionError("Pallas kernel does not match reference")
    print("KERNEL_OK")
</pallas_src>

<mosaic_0001>
module attributes {stable_mosaic.version = 11 : i64} {
  func.func @instant_graph_kernel(%arg0: memref<32x33xbf16, #tpu.memory_space<vmem>>, %arg1: memref<33x64xbf16, #tpu.memory_space<vmem>>, %arg2: memref<2x32x32xbf16, #tpu.memory_space<vmem>>, %arg3: memref<97x16xbf16, #tpu.memory_space<vmem>>, %arg4: memref<16x16xf32, #tpu.memory_space<vmem>>) attributes {dimension_semantics = [], scalar_prefetch = 0 : i64, scratch_operands = 0 : i64, tpu.core_type = #tpu.core_type<tc>} {
    %c0 = arith.constant 0 : index
    %c0_0 = arith.constant 0 : index
    %0 = vector.load %arg0[%c0, %c0_0] : memref<32x33xbf16, #tpu.memory_space<vmem>>, vector<32x33xbf16>
    %c0_1 = arith.constant 0 : index
    %c0_2 = arith.constant 0 : index
    %1 = vector.load %arg1[%c0_1, %c0_2] : memref<33x64xbf16, #tpu.memory_space<vmem>>, vector<33x64xbf16>
    %cst = arith.constant dense<0.000000e+00> : vector<32x64xf32>
    %2 = tpu.matmul %0, %1, %cst {dimension_numbers = #tpu.dot_dimension_numbers<[1], [0], [0], [1], [0, 0, 1, 1], [], []>} : vector<32x33xbf16>, vector<33x64xbf16>, vector<32x64xf32> -> vector<32x64xf32>
    %3 = vector.extract_strided_slice %2 {offsets = [0, 0], sizes = [32, 32], strides = [1, 1]} : vector<32x64xf32> to vector<32x32xf32>
    %4 = vector.extract_strided_slice %2 {offsets = [0, 32], sizes = [32, 32], strides = [1, 1]} : vector<32x64xf32> to vector<32x32xf32>
    %c0_3 = arith.constant 0 : index
    %c0_4 = arith.constant 0 : index
    %c0_5 = arith.constant 0 : index
    %5 = vector.load %arg2[%c0_3, %c0_4, %c0_5] : memref<2x32x32xbf16, #tpu.memory_space<vmem>>, vector<1x32x32xbf16>
    %6 = vector.shape_cast %5 : vector<1x32x32xbf16> to vector<32x32xbf16>
    %7 = arith.truncf %3 : vector<32x32xf32> to vector<32x32xbf16>
    %cst_6 = arith.constant dense<0.000000e+00> : vector<32x32xf32>
    %8 = tpu.matmul %6, %7, %cst_6 {dimension_numbers = #tpu.dot_dimension_numbers<[1], [0], [0], [1], [0, 0, 1, 1], [], []>} : vector<32x32xbf16>, vector<32x32xbf16>, vector<32x32xf32> -> vector<32x32xf32>
    %c1 = arith.constant 1 : index
    %c0_7 = arith.constant 0 : index
    %c0_8 = arith.constant 0 : index
    %9 = vector.load %arg2[%c1, %c0_7, %c0_8] : memref<2x32x32xbf16, #tpu.memory_space<vmem>>, vector<1x32x32xbf16>
    %10 = vector.shape_cast %9 : vector<1x32x32xbf16> to vector<32x32xbf16>
    %11 = arith.truncf %4 : vector<32x32xf32> to vector<32x32xbf16>
    %cst_9 = arith.constant dense<0.000000e+00> : vector<32x32xf32>
    %12 = tpu.matmul %10, %11, %cst_9 {dimension_numbers = #tpu.dot_dimension_numbers<[1], [0], [0], [1], [0, 0, 1, 1], [], []>} : vector<32x32xbf16>, vector<32x32xbf16>, vector<32x32xf32> -> vector<32x32xf32>
    %13 = arith.addf %8, %12 : vector<32x32xf32>
    %14 = arith.mulf %3, %3 : vector<32x32xf32>
    %15 = arith.mulf %4, %4 : vector<32x32xf32>
    %16 = arith.addf %14, %15 : vector<32x32xf32>
    %17 = math.sqrt %16 : vector<32x32xf32>
    %cst_10 = arith.constant 9.99999974E-5 : f32
    %18 = vector.broadcast %cst_10 : f32 to vector<32x32xf32>
    %19 = arith.addf %4, %18 : vector<32x32xf32>
    %20 = arith.divf %3, %19 : vector<32x32xf32>
    %21 = math.absf %20 : vector<32x32xf32>
    %cst_11 = arith.constant 2.41421366 : f32
    %22 = vector.broadcast %cst_11 : f32 to vector<32x32xf32>
    %23 = arith.cmpf ogt, %21, %22 : vector<32x32xf32>
    %cst_12 = arith.constant 0.414213568 : f32
    %24 = vector.broadcast %cst_12 : f32 to vector<32x32xf32>
    %25 = arith.cmpf ogt, %21, %24 : vector<32x32xf32>
    %cst_13 = arith.constant 0.785398185 : f32
    %cst_14 = arith.constant 0.000000e+00 : f32
    %26 = vector.broadcast %cst_13 : f32 to vector<32x32xf32>
    %27 = vector.broadcast %cst_14 : f32 to vector<32x32xf32>
    %28 = arith.select %25, %26, %27 : vector<32x32xi1>, vector<32x32xf32>
    %cst_15 = arith.constant 1.57079637 : f32
    %29 = vector.broadcast %cst_15 : f32 to vector<32x32xf32>
    %30 = arith.select %23, %29, %28 : vector<32x32xi1>, vector<32x32xf32>
    %31 = tpu.reciprocal %21 {approx = true} : vector<32x32xf32> -> vector<32x32xf32>
    %cst_16 = arith.constant 0.000000e+00 : f32
    %32 = vector.broadcast %cst_16 : f32 to vector<32x32xf32>
    %33 = arith.subf %32, %31 : vector<32x32xf32>
    %cst_17 = arith.constant 1.000000e+00 : f32
    %34 = vector.broadcast %cst_17 : f32 to vector<32x32xf32>
    %35 = arith.subf %21, %34 : vector<32x32xf32>
    %cst_18 = arith.constant 1.000000e+00 : f32
    %36 = vector.broadcast %cst_18 : f32 to vector<32x32xf32>
    %37 = arith.addf %21, %36 : vector<32x32xf32>
    %38 = tpu.reciprocal %37 {approx = true} : vector<32x32xf32> -> vector<32x32xf32>
    %39 = arith.mulf %35, %38 : vector<32x32xf32>
    %40 = arith.select %25, %39, %21 : vector<32x32xi1>, vector<32x32xf32>
    %41 = arith.select %23, %33, %40 : vector<32x32xi1>, vector<32x32xf32>
    %42 = arith.mulf %41, %41 : vector<32x32xf32>
    %cst_19 = arith.constant 0.0805374458 : f32
    %43 = vector.broadcast %cst_19 : f32 to vector<32x32xf32>
    %44 = arith.mulf %43, %42 : vector<32x32xf32>
    %cst_20 = arith.constant 0.138776854 : f32
    %45 = vector.broadcast %cst_20 : f32 to vector<32x32xf32>
    %46 = arith.subf %44, %45 : vector<32x32xf32>
    %47 = arith.mulf %46, %42 : vector<32x32xf32>
    %cst_21 = arith.constant 0.199777111 : f32
    %48 = vector.broadcast %cst_21 : f32 to vector<32x32xf32>
    %49 = arith.addf %47, %48 : vector<32x32xf32>
    %50 = arith.mulf %49, %42 : vector<32x32xf32>
    %cst_22 = arith.constant 0.333329499 : f32
    %51 = vector.broadcast %cst_22 : f32 to vector<32x32xf32>
    %52 = arith.subf %50, %51 : vector<32x32xf32>
    %53 = arith.mulf %52, %42 : vector<32x32xf32>
    %54 = arith.mulf %53, %41 : vector<32x32xf32>
    %55 = arith.addf %30, %54 : vector<32x32xf32>
    %56 = arith.addf %55, %41 : vector<32x32xf32>
    %cst_23 = arith.constant 0.000000e+00 : f32
    %57 = vector.broadcast %cst_23 : f32 to vector<32x32xf32>
    %58 = arith.cmpf olt, %20, %57 : vector<32x32xf32>
    %cst_24 = arith.constant 0.000000e+00 : f32
    %59 = vector.broadcast %cst_24 : f32 to vector<32x32xf32>
    %60 = arith.subf %59, %56 : vector<32x32xf32>
    %61 = arith.select %58, %60, %56 : vector<32x32xi1>, vector<32x32xf32>
    %cst_25 = arith.constant 1.000000e+00 : f32
    %62 = vector.broadcast %cst_25 : f32 to vector<32x1xf32>
    %63 = tpu.concatenate %13, %17, %61, %62 in 1 : vector<32x32xf32>, vector<32x32xf32>, vector<32x32xf32>, vector<32x1xf32> -> vector<32x97xf32>
    %64 = arith.truncf %63 : vector<32x97xf32> to vector<32x97xbf16>
    %c0_26 = arith.constant 0 : index
    %c0_27 = arith.constant 0 : index
    %65 = vector.load %arg3[%c0_26, %c0_27] : memref<97x16xbf16, #tpu.memory_space<vmem>>, vector<97x16xbf16>
    %cst_28 = arith.constant dense<0.000000e+00> : vector<32x16xf32>
    %66 = tpu.matmul %64, %65, %cst_28 {dimension_numbers = #tpu.dot_dimension_numbers<[1], [0], [0], [1], [0, 0, 1, 1], [], []>} : vector<32x97xbf16>, vector<97x16xbf16>, vector<32x16xf32> -> vector<32x16xf32>
    %cst_29 = arith.constant 0.333333343 : f32
    %67 = vector.broadcast %cst_29 : f32 to vector<32x16xf32>
    %68 = arith.mulf %66, %67 : vector<32x16xf32>
    %69 = arith.negf %68 : vector<32x16xf32>
    %70 = math.exp %69 : vector<32x16xf32>
    %cst_30 = arith.constant 1.000000e+00 : f32
    %71 = vector.broadcast %cst_30 : f32 to vector<32x16xf32>
    %72 = arith.addf %71, %70 : vector<32x16xf32>
    %73 = arith.divf %71, %72 : vector<32x16xf32>
    %74 = vector.extract_strided_slice %73 {offsets = [0, 0], sizes = [16, 16], strides = [1, 1]} : vector<32x16xf32> to vector<16x16xf32>
    %75 = vector.extract_strided_slice %73 {offsets = [16, 0], sizes = [16, 16], strides = [1, 1]} : vector<32x16xf32> to vector<16x16xf32>
    %76 = arith.addf %74, %75 : vector<16x16xf32>
    %cst_31 = arith.constant 5.000000e-01 : f32
    %77 = vector.broadcast %cst_31 : f32 to vector<16x16xf32>
    %78 = arith.mulf %76, %77 : vector<16x16xf32>
    %79 = arith.negf %78 : vector<16x16xf32>
    %80 = math.exp %79 : vector<16x16xf32>
    %cst_32 = arith.constant 1.000000e+00 : f32
    %81 = vector.broadcast %cst_32 : f32 to vector<16x16xf32>
    %82 = arith.addf %81, %80 : vector<16x16xf32>
    %83 = arith.divf %81, %82 : vector<16x16xf32>
    %c0_33 = arith.constant 0 : index
    %c0_34 = arith.constant 0 : index
    %84 = vector.load %arg4[%c0_33, %c0_34] : memref<16x16xf32, #tpu.memory_space<vmem>>, vector<16x16xf32>
    tpu.vector_store %arg4[%c0_33, %c0_34], %83 {strides = array<i32>} : memref<16x16xf32, #tpu.memory_space<vmem>>, vector<16x16xf32>,
    return
  }
}

</mosaic_0001>

<llo_original>
// kernel: tpu_custom_call.1
$region0: #{tpu_custom_call.1}
  #allocation0 [shape = 'u32[]', space=smem, size = 0x4, offset = 0x4, fixed_abs, tag = 'smem constant byte address 0x4 - core index']
  #allocation1 [shape = 'u32[144,128]{1,0:T(1,128)}', space=vmem, size = 0x12000, scoped, tag = 'internal scratch']
  %s0 = inlined_call_operand.hbm [shape: bf16[32,33], index: 0, kind: input, shape index: {}]
  %s1 = inlined_call_operand.vmem [shape: bf16[33,64], index: 1, kind: input, shape index: {}]
  %s2 = inlined_call_operand.vmem [shape: bf16[2,32,32], index: 2, kind: input, shape index: {}]
  %s3 = inlined_call_operand.vmem [shape: bf16[97,16], index: 3, kind: input, shape index: {}]
  %s4 = inlined_call_operand.hbm [shape: f32[16,16], index: 4, kind: output, shape index: {}]
  %s5 = sld [smem:[#allocation0]]
  $region30: #{tpu_custom_call.1} parent=0
    _
  %s7 = ssub.s32 1, %s5
  %s8 = scalar_select 0, %s7, %s5
  $region1: #{tpu_custom_call.1} parent=0
    #allocation2 [shape = 'u8[8192]{0}', space=vmem, size = 0x2000, scoped, tag = 'input window, operand 0, single buffered']
    #allocation3 [shape = 's32[1]{0}', space=sflag, size = 0x4, scoped, tag = 'scoped memory for tpu_custom_call.1']
    #allocation4 [shape = 's32[1]{0}', space=sflag, size = 0x4, scoped, tag = 'scoped memory for tpu_custom_call.1']
    #allocation5 [shape = 'u8[8192]{0}', space=vmem, size = 0x2000, scoped, tag = 'output window, operand 0, single buffered']
    %9 = vsyncpa [#allocation3], 0
    %10 = vsyncpa [#allocation4], 0
    // Predicated region
    $region2: #{tpu_custom_call.1} parent=1 // pred_check
      _
    $region3: #{tpu_custom_call.1} parent=1 // pred_check_branch
      %12 = sbr.rel (0) target = $region5
    $region4: #{tpu_custom_call.1} parent=1 // pred_region
      %s14 = ssub.s32 256, 256
      %15 = vsyncadd [#allocation3], %s14
      %s16 = sshll.u32 [#allocation2], 4
      %s17 = int_to_ptr.vmem [resolvable:$true] %s16
      %22 = dma.hbm_to_vmem [thread:$0]  %s0, 256, %s17, [#allocation3], 64, 64, 4
    $region5: #{tpu_custom_call.1} parent=1 // pred_fallthru
      _
    // Predicated region
    $region6: #{tpu_custom_call.1} parent=1 // pred_check
      _
    $region7: #{tpu_custom_call.1} parent=1 // pred_check_branch
      %24 = sbr.rel (0) target = $region9
    $region8: #{tpu_custom_call.1} parent=1 // pred_region
      _
    $region9: #{tpu_custom_call.1} parent=1 // pred_fallthru
      _
    // Predicated region
    $region10: #{tpu_custom_call.1} parent=1 // pred_check
      _
    $region11: #{tpu_custom_call.1} parent=1 // pred_check_branch
      %26 = sbr.rel (0) target = $region13
    $region12: #{tpu_custom_call.1} parent=1 // pred_region
      _
    $region13: #{tpu_custom_call.1} parent=1 // pred_fallthru
      _
    // Predicated region
    $region14: #{tpu_custom_call.1} parent=1 // pred_check
      _
    $region15: #{tpu_custom_call.1} parent=1 // pred_check_branch
      %28 = sbr.rel (0) target = $region17
    $region16: #{tpu_custom_call.1} parent=1 // pred_region
      _
    $region17: #{tpu_custom_call.1} parent=1 // pred_fallthru
      _
    // Predicated region
    $region18: #{tpu_custom_call.1} parent=1 // pred_check
      _
    $region19: #{tpu_custom_call.1} parent=1 // pred_check_branch
      %30 = sbr.rel (0) target = $region21
    $region20: #{tpu_custom_call.1} parent=1 // pred_region
      %31 = dma.done [#allocation3], 256
    $region21: #{tpu_custom_call.1} parent=1 // pred_fallthru
      _
    %v33 = vld [vmem:[#allocation2] sm:$0xf]
    %v34 = vld [vmem:[#allocation2 + $0x4] sm:$0xf]
    %v35 = vld [vmem:[#allocation2 + $0x8] sm:$0xf]
    %v36 = vld [vmem:[#allocation2 + $0xc] sm:$0xf]
    %v37 = vld [vmem:[%s1] sm:$0xf]
    %v38 = vld [vmem:[%s1 + $0x4] sm:$0xf]
    %v39 = vld [vmem:[%s1 + $0x8] sm:$0xf]
    %v40 = vld [vmem:[%s1 + $0xc] sm:$0xf]
    %v41 = vld [vmem:[%s1 + $0x10] sm:$0x1]
    %v46 = vunpack.c.l.b16 %v33
    %v47 = vunpack.c.l.b16 %v34
    %v48 = vunpack.c.l.b16 %v35
    %v49 = vunpack.c.l.b16 %v36
    %v50 = vpack.c.b16 %v47, %v46
    %v51 = vpack.c.b16 %v49, %v48
    %v57 = vunpack.c.l.b16 %v37
    %v58 = vunpack.c.l.b16 %v38
    %v59 = vunpack.c.l.b16 %v39
    %v60 = vunpack.c.l.b16 %v40
    %v61 = vunpack.c.l.b16 %v41
    %v62 = vpack.c.b16 %v58, %v57
    %v63 = vpack.c.b16 %v60, %v59
    %v64 = vpack.c.b16 %v61, %v61
    %vm67 = vcmask 269312
    %v69 = vsel %vm67, %v50, 0
    %v72 = vsel %vm67, %v51, 0
    %vm74 = vcmask 1040384
    %v75 = vsel 0, 4294967295, 65535
    %v76 = vsel %vm74, %v75, 0
    %v78 = vand.u32 %v64, %v76
    %80 = vmatprep.subr.bf16.mxu0 0
    %81 = vmatpush1.bf16.msra.mxu0 0
    %82 = vmatprep.subr.bf16.mxu0 0
    %83 = vmatpush1.bf16.msra.mxu0 0
    %84 = vmatprep.subr.bf16.mxu0 0
    %85 = vmatpush1.bf16.msra.mxu0 0
    %86 = vmatprep.subr.bf16.mxu0 0
    %87 = vmatpush1.bf16.msra.mxu0 0
    %88 = vmatprep.subr.bf16.mxu0 0
    %89 = vmatpush1.bf16.msra.mxu0 0
    %90 = vmatprep.subr.bf16.mxu0 0
    %91 = vmatpush1.bf16.msra.mxu0 %v78
    %92 = vmatprep.subr.bf16.mxu0 0
    %93 = vmatpush1.bf16.msra.mxu0 %v63
    %94 = vmatprep.subr.bf16.mxu0 0
    %95 = vmatpush1.bf16.msra.mxu0 %v62
    %96 = vmatprep.subr.bf16.mxu0 0
    %97 = vmatpush2.bf16.msra.mxu0 0
    %98 = vmatprep.subr.bf16.mxu0 0
    %99 = vmatpush2.bf16.msra.mxu0 0
    %100 = vmatprep.subr.bf16.mxu0 0
    %101 = vmatpush2.bf16.msra.mxu0 0
    %102 = vmatprep.subr.bf16.mxu0 0
    %103 = vmatpush2.bf16.msra.mxu0 0
    %104 = vmatprep.subr.bf16.mxu0 0
    %105 = vmatpush2.bf16.msra.mxu0 0
    %106 = vmatprep.subr.bf16.mxu0 0
    %107 = vmatpush2.bf16.msra.mxu0 0
    %108 = vmatprep.subr.bf16.mxu0 0
    %109 = vmatpush2.bf16.msra.mxu0 0
    %110 = vmatprep.subr.bf16.mxu0 0
    %111 = vmatpush2.bf16.msra.mxu0 0
    %112 = vmatprep.mubr.bf16.mxu0 0
    %113 = vmatmul.mubr.bf16.gmra.mxu0 %v69
    %v114 = vpop.f32.mrf.mxu0
    %v115 = vadd.f32 0.0, %v114
    %v116 = vpop.f32.mrf.mxu0
    %v117 = vpop.f32.mrf.mxu0
    %v118 = vadd.f32 0.0, %v117
    %v119 = vpop.f32.mrf.mxu0
    %120 = vmatprep.mubr.bf16.mxu0 0
    %121 = vmatmul.mubr.bf16.gmra.mxu0 %v72
    %v122 = vpop.f32.mrf.mxu0
    %v123 = vadd.f32 0.0, %v122
    %v124 = vpop.f32.mrf.mxu0
    %v125 = vpop.f32.mrf.mxu0
    %v126 = vadd.f32 0.0, %v125
    %v127 = vpop.f32.mrf.mxu0
    %128 = vdwg.mxu0
    %v129 = vld [vmem:[%s2] sm:$0xf]
    %v130 = vld [vmem:[%s2 + $0x4] sm:$0xf]
    %v131 = vld [vmem:[%s2 + $0x8] sm:$0xf]
    %v132 = vld [vmem:[%s2 + $0xc] sm:$0xf]
    %v133 = vpack.c.bf16 %v118, %v115
    %v134 = vpack.c.bf16 %v126, %v123
    %s135 = scalar_lea.vmem %s2, 16
    %v136 = vld [vmem:[%s135] sm:$0xf]
    %v137 = vld [vmem:[%s135 + $0x4] sm:$0xf]
    %v138 = vld [vmem:[%s135 + $0x8] sm:$0xf]
    %v139 = vld [vmem:[%s135 + $0xc] sm:$0xf]
    %v144 = vunpack.c.l.b16 %v136
    %v145 = vunpack.c.l.b16 %v137
    %v146 = vunpack.c.l.b16 %v138
    %v147 = vunpack.c.l.b16 %v139
    %v148 = vpack.c.b16 %v145, %v144
    %v149 = vpack.c.b16 %v147, %v146
    %152 = vrot.lane.b32.xlu0 %v133, 96
    %v153 = vpop.permute.xlu0 %152
    %154 = vrot.lane.b32.xlu0 %v134, 96
    %v155 = vpop.permute.xlu0 %154
    %vm158 = vcmask 261120
    %v160 = vsel %vm158, %v148, 0
    %v163 = vsel %vm158, %v149, 0
    %165 = vmatprep.subr.bf16.mxu0 0
    %166 = vmatpush1.bf16.msra.mxu0 0
    %167 = vmatprep.subr.bf16.mxu0 0
    %168 = vmatpush1.bf16.msra.mxu0 0
    %169 = vmatprep.subr.bf16.mxu0 0
    %170 = vmatpush1.bf16.msra.mxu0 0
    %171 = vmatprep.subr.bf16.mxu0 0
    %172 = vmatpush1.bf16.msra.mxu0 0
    %173 = vmatprep.subr.bf16.mxu0 0
    %174 = vmatpush1.bf16.msra.mxu0 0
    %175 = vmatprep.subr.bf16.mxu0 0
    %176 = vmatpush1.bf16.msra.mxu0 0
    %177 = vmatprep.subr.bf16.mxu0 0
    %178 = vmatpush1.bf16.msra.mxu0 %v155
    %179 = vmatprep.subr.bf16.mxu0 0
    %180 = vmatpush1.bf16.msra.mxu0 %v153
    %181 = vmatprep.subr.bf16.mxu0 0
    %182 = vmatpush2.bf16.msra.mxu0 0
    %183 = vmatprep.subr.bf16.mxu0 0
    %184 = vmatpush2.bf16.msra.mxu0 0
    %185 = vmatprep.subr.bf16.mxu0 0
    %186 = vmatpush2.bf16.msra.mxu0 0
    %187 = vmatprep.subr.bf16.mxu0 0
    %188 = vmatpush2.bf16.msra.mxu0 0
    %189 = vmatprep.subr.bf16.mxu0 0
    %190 = vmatpush2.bf16.msra.mxu0 0
    %191 = vmatprep.subr.bf16.mxu0 0
    %192 = vmatpush2.bf16.msra.mxu0 0
    %193 = vmatprep.subr.bf16.mxu0 0
    %194 = vmatpush2.bf16.msra.mxu0 0
    %195 = vmatprep.subr.bf16.mxu0 0
    %196 = vmatpush2.bf16.msra.mxu0 0
    %197 = vmatprep.mubr.bf16.mxu0 0
    %198 = vmatmul.mubr.bf16.gmra.mxu0 %v160
    %v199 = vpop.f32.mrf.mxu0
    %v200 = vadd.f32 0.0, %v199
    %v201 = vpop.f32.mrf.mxu0
    %v202 = vpop.f32.mrf.mxu0
    %v203 = vadd.f32 0.0, %v202
    %v204 = vpop.f32.mrf.mxu0
    %205 = vmatprep.mubr.bf16.mxu0 0
    %206 = vmatmul.mubr.bf16.gmra.mxu0 %v163
    %v207 = vpop.f32.mrf.mxu0
    %v208 = vadd.f32 0.0, %v207
    %v209 = vpop.f32.mrf.mxu0
    %v210 = vpop.f32.mrf.mxu0
    %v211 = vadd.f32 0.0, %v210
    %v212 = vpop.f32.mrf.mxu0
    %213 = vdwg.mxu0
    %v218 = vunpack.c.l.b16 %v129
    %v219 = vunpack.c.l.b16 %v130
    %v220 = vunpack.c.l.b16 %v131
    %v221 = vunpack.c.l.b16 %v132
    %v222 = vpack.c.b16 %v219, %v218
    %v223 = vpack.c.b16 %v221, %v220
    %v225 = vsel %vm158, %v222, 0
    %v228 = vsel %vm158, %v223, 0
    %230 = vmatprep.subr.bf16.mxu0 0
    %231 = vmatpush1.bf16.msra.mxu0 0
    %232 = vmatprep.subr.bf16.mxu0 0
    %233 = vmatpush1.bf16.msra.mxu0 0
    %234 = vmatprep.subr.bf16.mxu0 0
    %235 = vmatpush1.bf16.msra.mxu0 0
    %236 = vmatprep.subr.bf16.mxu0 0
    %237 = vmatpush1.bf16.msra.mxu0 0
    %238 = vmatprep.subr.bf16.mxu0 0
    %239 = vmatpush1.bf16.msra.mxu0 0
    %240 = vmatprep.subr.bf16.mxu0 0
    %241 = vmatpush1.bf16.msra.mxu0 0
    %242 = vmatprep.subr.bf16.mxu0 0
    %243 = vmatpush1.bf16.msra.mxu0 %v134
    %244 = vmatprep.subr.bf16.mxu0 0
    %245 = vmatpush1.bf16.msra.mxu0 %v133
    %246 = vmatprep.subr.bf16.mxu0 0
    %247 = vmatpush2.bf16.msra.mxu0 0
    %248 = vmatprep.subr.bf16.mxu0 0
    %249 = vmatpush2.bf16.msra.mxu0 0
    %250 = vmatprep.subr.bf16.mxu0 0
    %251 = vmatpush2.bf16.msra.mxu0 0
    %252 = vmatprep.subr.bf16.mxu0 0
    %253 = vmatpush2.bf16.msra.mxu0 0
    %254 = vmatprep.subr.bf16.mxu0 0
    %255 = vmatpush2.bf16.msra.mxu0 0
    %256 = vmatprep.subr.bf16.mxu0 0
    %257 = vmatpush2.bf16.msra.mxu0 0
    %258 = vmatprep.subr.bf16.mxu0 0
    %259 = vmatpush2.bf16.msra.mxu0 0
    %260 = vmatprep.subr.bf16.mxu0 0
    %261 = vmatpush2.bf16.msra.mxu0 0
    %262 = vmatprep.mubr.bf16.mxu0 0
    %263 = vmatmul.mubr.bf16.gmra.mxu0 %v225
    %v264 = vpop.f32.mrf.mxu0
    %v265 = vadd.f32 %v200, %v264
    %v266 = vpop.f32.mrf.mxu0
    %v267 = vpop.f32.mrf.mxu0
    %v268 = vadd.f32 %v203, %v267
    %v269 = vpop.f32.mrf.mxu0
    %270 = vmatprep.mubr.bf16.mxu0 0
    %271 = vmatmul.mubr.bf16.gmra.mxu0 %v228
    %v272 = vpop.f32.mrf.mxu0
    %v273 = vadd.f32 %v208, %v272
    %v274 = vpop.f32.mrf.mxu0
    %v275 = vpop.f32.mrf.mxu0
    %v276 = vadd.f32 %v211, %v275
    %v277 = vpop.f32.mrf.mxu0
    %278 = vdwg.mxu0
    %v279 = vmul.f32 %v115, %v115
    %v280 = vmul.f32 %v118, %v118
    %v281 = vmul.f32 %v123, %v123
    %v282 = vmul.f32 %v126, %v126
    %287 = vrot.lane.b32.xlu0 %v279, 96
    %v288 = vpop.permute.xlu0 %287
    %289 = vrot.lane.b32.xlu0 %v280, 96
    %v290 = vpop.permute.xlu0 %289
    %291 = vrot.lane.b32.xlu0 %v281, 96
    %v292 = vpop.permute.xlu0 %291
    %293 = vrot.lane.b32.xlu0 %v282, 96
    %v294 = vpop.permute.xlu0 %293
    %v299 = vadd.f32 %v279, %v288
    %v300 = vadd.f32 %v280, %v290
    %v301 = vadd.f32 %v281, %v292
    %v302 = vadd.f32 %v282, %v294
    %v303 = vrsqrt.pop %v299
    %v304 = vmul.f32 %v299, %v303
    %vm305 = vcmp.eq.f32.partialorder %v299, inf
    %v306 = vsel %vm305, %v299, %v304
    %vm307 = vcmp.eq.f32.partialorder %v299, 0.0
    %v308 = vand.u32 %v299, 2147483648
    %v309 = vsel %vm307, %v308, %v306
    %v310 = vrsqrt.pop %v300
    %v311 = vmul.f32 %v300, %v310
    %vm312 = vcmp.eq.f32.partialorder %v300, inf
    %v313 = vsel %vm312, %v300, %v311
    %vm314 = vcmp.eq.f32.partialorder %v300, 0.0
    %v315 = vand.u32 %v300, 2147483648
    %v316 = vsel %vm314, %v315, %v313
    %v317 = vrsqrt.pop %v301
    %v318 = vmul.f32 %v301, %v317
    %vm319 = vcmp.eq.f32.partialorder %v301, inf
    %v320 = vsel %vm319, %v301, %v318
    %vm321 = vcmp.eq.f32.partialorder %v301, 0.0
    %v322 = vand.u32 %v301, 2147483648
    %v323 = vsel %vm321, %v322, %v320
    %v324 = vrsqrt.pop %v302
    %v325 = vmul.f32 %v302, %v324
    %vm326 = vcmp.eq.f32.partialorder %v302, inf
    %v327 = vsel %vm326, %v302, %v325
    %vm328 = vcmp.eq.f32.partialorder %v302, 0.0
    %v329 = vand.u32 %v302, 2147483648
    %v330 = vsel %vm328, %v329, %v327
    %v331 = vadd.f32 %v115, 0.0001
    %v332 = vadd.f32 %v118, 0.0001
    %v333 = vadd.f32 %v123, 0.0001
    %v334 = vadd.f32 %v126, 0.0001
    %339 = vrot.lane.b32.xlu0 %v331, 96
    %v340 = vpop.permute.xlu0 %339
    %341 = vrot.lane.b32.xlu0 %v332, 96
    %v342 = vpop.permute.xlu0 %341
    %343 = vrot.lane.b32.xlu0 %v333, 96
    %v344 = vpop.permute.xlu0 %343
    %345 = vrot.lane.b32.xlu0 %v334, 96
    %v346 = vpop.permute.xlu0 %345
    %v351 = vrcp.pop %v340
    %v352 = vmul.f32 %v115, %v351
    %v353 = vrcp.pop %v342
    %v354 = vmul.f32 %v118, %v353
    %v355 = vrcp.pop %v344
    %v356 = vmul.f32 %v123, %v355
    %v357 = vrcp.pop %v346
    %v358 = vmul.f32 %v126, %v357
    %v359 = vand.u32 2147483647, %v352
    %v360 = vand.u32 2147483647, %v354
    %v361 = vand.u32 2147483647, %v356
    %v362 = vand.u32 2147483647, %v358
    %vm363 = vcmp.gt.f32.partialorder %v359, 2.4142137
    %vm364 = vcmp.gt.f32.partialorder %v360, 2.4142137
    %vm365 = vcmp.gt.f32.partialorder %v361, 2.4142137
    %vm366 = vcmp.gt.f32.partialorder %v362, 2.4142137
    %vm367 = vcmp.gt.f32.partialorder %v359, 0.41421357
    %vm368 = vcmp.gt.f32.partialorder %v360, 0.41421357
    %vm369 = vcmp.gt.f32.partialorder %v361, 0.41421357
    %vm370 = vcmp.gt.f32.partialorder %v362, 0.41421357
    %v371 = vsel %vm367, 0.7853982, 0.0
    %v372 = vsel %vm368, 0.7853982, 0.0
    %v373 = vsel %vm369, 0.7853982, 0.0
    %v374 = vsel %vm370, 0.7853982, 0.0
    %v375 = vsel %vm363, 1.5707964, %v371
    %v376 = vsel %vm364, 1.5707964, %v372
    %v377 = vsel %vm365, 1.5707964, %v373
    %v378 = vsel %vm366, 1.5707964, %v374
    %v379 = vrcp.pop %v359
    %v380 = vrcp.pop %v360
    %v381 = vrcp.pop %v361
    %v382 = vrcp.pop %v362
    %v383 = vsub.f32 0.0, %v379
    %v384 = vsub.f32 0.0, %v380
    %v385 = vsub.f32 0.0, %v381
    %v386 = vsub.f32 0.0, %v382
    %v387 = vsub.f32 %v359, 1.0
    %v388 = vsub.f32 %v360, 1.0
    %v389 = vsub.f32 %v361, 1.0
    %v390 = vsub.f32 %v362, 1.0
    %v391 = vadd.f32 %v359, 1.0
    %v392 = vadd.f32 %v360, 1.0
    %v393 = vadd.f32 %v361, 1.0
    %v394 = vadd.f32 %v362, 1.0
    %v395 = vrcp.pop %v391
    %v396 = vrcp.pop %v392
    %v397 = vrcp.pop %v393
    %v398 = vrcp.pop %v394
    %v399 = vmul.f32 %v387, %v395
    %v400 = vmul.f32 %v388, %v396
    %v401 = vmul.f32 %v389, %v397
    %v402 = vmul.f32 %v390, %v398
    %v403 = vsel %vm367, %v399, %v359
    %v404 = vsel %vm368, %v400, %v360
    %v405 = vsel %vm369, %v401, %v361
    %v406 = vsel %vm370, %v402, %v362
    %v407 = vsel %vm363, %v383, %v403
    %v408 = vsel %vm364, %v384, %v404
    %v409 = vsel %vm365, %v385, %v405
    %v410 = vsel %vm366, %v386, %v406
    %v411 = vmul.f32 %v407, %v407
    %v412 = vmul.f32 %v408, %v408
    %v413 = vmul.f32 %v409, %v409
    %v414 = vmul.f32 %v410, %v410
    %v415 = vmul.f32 %v411, 0.080537446
    %v416 = vmul.f32 %v412, 0.080537446
    %v417 = vmul.f32 %v413, 0.080537446
    %v418 = vmul.f32 %v414, 0.080537446
    %v419 = vsub.f32 %v415, 0.13877685
    %v420 = vsub.f32 %v416, 0.13877685
    %v421 = vsub.f32 %v417, 0.13877685
    %v422 = vsub.f32 %v418, 0.13877685
    %v423 = vmul.f32 %v419, %v411
    %v424 = vmul.f32 %v420, %v412
    %v425 = vmul.f32 %v421, %v413
    %v426 = vmul.f32 %v422, %v414
    %v427 = vadd.f32 %v423, 0.19977711
    %v428 = vadd.f32 %v424, 0.19977711
    %v429 = vadd.f32 %v425, 0.19977711
    %v430 = vadd.f32 %v426, 0.19977711
    %v431 = vmul.f32 %v427, %v411
    %v432 = vmul.f32 %v428, %v412
    %v433 = vmul.f32 %v429, %v413
    %v434 = vmul.f32 %v430, %v414
    %v435 = vsub.f32 %v431, 0.3333295
    %v436 = vsub.f32 %v432, 0.3333295
    %v437 = vsub.f32 %v433, 0.3333295
    %v438 = vsub.f32 %v434, 0.3333295
    %v439 = vmul.f32 %v435, %v411
    %v440 = vmul.f32 %v436, %v412
    %v441 = vmul.f32 %v437, %v413
    %v442 = vmul.f32 %v438, %v414
    %v443 = vmul.f32 %v439, %v407
    %v444 = vmul.f32 %v440, %v408
    %v445 = vmul.f32 %v441, %v409
    %v446 = vmul.f32 %v442, %v410
    %v447 = vadd.f32 %v375, %v443
    %v448 = vadd.f32 %v376, %v444
    %v449 = vadd.f32 %v377, %v445
    %v450 = vadd.f32 %v378, %v446
    %v451 = vadd.f32 %v447, %v407
    %v452 = vadd.f32 %v448, %v408
    %v453 = vadd.f32 %v449, %v409
    %v454 = vadd.f32 %v450, %v410
    %vm455 = vcmp.lt.f32.partialorder %v352, 0.0
    %vm456 = vcmp.lt.f32.partialorder %v354, 0.0
    %vm457 = vcmp.lt.f32.partialorder %v356, 0.0
    %vm458 = vcmp.lt.f32.partialorder %v358, 0.0
    %v459 = vsub.f32 0.0, %v451
    %v460 = vsub.f32 0.0, %v452
    %v461 = vsub.f32 0.0, %v453
    %v462 = vsub.f32 0.0, %v454
    %v463 = vsel %vm455, %v459, %v451
    %v464 = vsel %vm456, %v460, %v452
    %v465 = vsel %vm457, %v461, %v453
    %v466 = vsel %vm458, %v462, %v454
    %471 = vrot.lane.b32.xlu0 %v309, 32
    %v472 = vpop.permute.xlu0 %471
    %473 = vrot.lane.b32.xlu0 %v316, 32
    %v474 = vpop.permute.xlu0 %473
    %475 = vrot.lane.b32.xlu0 %v323, 32
    %v476 = vpop.permute.xlu0 %475
    %477 = vrot.lane.b32.xlu0 %v330, 32
    %v478 = vpop.permute.xlu0 %477
    %487 = vrot.lane.b32.xlu0 %v463, 64
    %v488 = vpop.permute.xlu0 %487
    %489 = vrot.lane.b32.xlu0 %v464, 64
    %v490 = vpop.permute.xlu0 %489
    %491 = vrot.lane.b32.xlu0 %v465, 64
    %v492 = vpop.permute.xlu0 %491
    %493 = vrot.lane.b32.xlu0 %v466, 64
    %v494 = vpop.permute.xlu0 %493
    %v499 = vsel %vm158, %v265, %v472
    %v500 = vsel %vm158, %v268, %v474
    %v501 = vsel %vm158, %v273, %v476
    %v502 = vsel %vm158, %v276, %v478
    %vm503 = vcmask 523264
    %v504 = vsel %vm503, %v499, %v488
    %v505 = vsel %vm503, %v500, %v490
    %v506 = vsel %vm503, %v501, %v492
    %v507 = vsel %vm503, %v502, %v494
    %vm508 = vcmask 785408
    %v509 = vsel %vm508, %v504, 1.0
    %v510 = vsel %vm508, %v505, 1.0
    %v511 = vsel %vm508, %v506, 1.0
    %v512 = vsel %vm508, %v507, 1.0
    %v513 = vpack.c.bf16 %v510, %v509
    %v514 = vpack.c.bf16 %v512, %v511
    %v515 = vld [vmem:[%s3] sm:$0xf]
    %v516 = vld [vmem:[%s3 + $0x4] sm:$0xf]
    %v517 = vld [vmem:[%s3 + $0x8] sm:$0xf]
    %v518 = vld [vmem:[%s3 + $0xc] sm:$0xf]
    %v519 = vld [vmem:[%s3 + $0x10] sm:$0xf]
    %v520 = vld [vmem:[%s3 + $0x14] sm:$0xf]
    %v521 = vld [vmem:[%s3 + $0x18] sm:$0xf]
    %v522 = vld [vmem:[%s3 + $0x1c] sm:$0xf]
    %v523 = vld [vmem:[%s3 + $0x20] sm:$0xf]
    %v524 = vld [vmem:[%s3 + $0x24] sm:$0xf]
    %v525 = vld [vmem:[%s3 + $0x28] sm:$0xf]
    %v526 = vld [vmem:[%s3 + $0x2c] sm:$0xf]
    %v527 = vld [vmem:[%s3 + $0x30] sm:$0x1]
    %v541 = vunpack.c.l.b16 %v515
    %v542 = vunpack.c.l.b16 %v516
    %v543 = vunpack.c.l.b16 %v517
    %v544 = vunpack.c.l.b16 %v518
    %v545 = vunpack.c.l.b16 %v519
    %v546 = vunpack.c.l.b16 %v520
    %v547 = vunpack.c.l.b16 %v521
    %v548 = vunpack.c.l.b16 %v522
    %v549 = vunpack.c.l.b16 %v523
    %v550 = vunpack.c.l.b16 %v524
    %v551 = vunpack.c.l.b16 %v525
    %v552 = vunpack.c.l.b16 %v526
    %v553 = vunpack.c.l.b16 %v527
    %v554 = vpack.c.b16 %v542, %v541
    %v555 = vpack.c.b16 %v544, %v543
    %v556 = vpack.c.b16 %v546, %v545
    %v557 = vpack.c.b16 %v548, %v547
    %v558 = vpack.c.b16 %v550, %v549
    %v559 = vpack.c.b16 %v552, %v551
    %v560 = vpack.c.b16 %v553, %v553
    %vm567 = vcmask 793600
    %v569 = vsel %vm567, %v513, 0
    %v572 = vsel %vm567, %v514, 0
    %v575 = vand.u32 %v560, %v76
    %577 = vmatprep.subr.bf16.mxu0 0
    %578 = vmatpush1.bf16.msra.mxu0 0
    %579 = vmatprep.subr.bf16.mxu0 0
    %580 = vmatpush1.bf16.msra.mxu0 %v575
    %581 = vmatprep.subr.bf16.mxu0 0
    %582 = vmatpush1.bf16.msra.mxu0 %v559
    %583 = vmatprep.subr.bf16.mxu0 0
    %584 = vmatpush1.bf16.msra.mxu0 %v558
    %585 = vmatprep.subr.bf16.mxu0 0
    %586 = vmatpush1.bf16.msra.mxu0 %v557
    %587 = vmatprep.subr.bf16.mxu0 0
    %588 = vmatpush1.bf16.msra.mxu0 %v556
    %589 = vmatprep.subr.bf16.mxu0 0
    %590 = vmatpush1.bf16.msra.mxu0 %v555
    %591 = vmatprep.subr.bf16.mxu0 0
    %592 = vmatpush1.bf16.msra.mxu0 %v554
    %593 = vmatprep.subr.bf16.mxu0 0
    %594 = vmatpush2.bf16.msra.mxu0 0
    %595 = vmatprep.subr.bf16.mxu0 0
    %596 = vmatpush2.bf16.msra.mxu0 0
    %597 = vmatprep.subr.bf16.mxu0 0
    %598 = vmatpush2.bf16.msra.mxu0 0
    %599 = vmatprep.subr.bf16.mxu0 0
    %600 = vmatpush2.bf16.msra.mxu0 0
    %601 = vmatprep.subr.bf16.mxu0 0
    %602 = vmatpush2.bf16.msra.mxu0 0
    %603 = vmatprep.subr.bf16.mxu0 0
    %604 = vmatpush2.bf16.msra.mxu0 0
    %605 = vmatprep.subr.bf16.mxu0 0
    %606 = vmatpush2.bf16.msra.mxu0 0
    %607 = vmatprep.subr.bf16.mxu0 0
    %608 = vmatpush2.bf16.msra.mxu0 0
    %609 = vmatprep.mubr.bf16.mxu0 0
    %610 = vmatmul.mubr.bf16.gmra.mxu0 %v569
    %v611 = vpop.f32.mrf.mxu0
    %v612 = vadd.f32 0.0, %v611
    %v613 = vpop.f32.mrf.mxu0
    %v614 = vpop.f32.mrf.mxu0
    %v615 = vadd.f32 0.0, %v614
    %v616 = vpop.f32.mrf.mxu0
    %617 = vmatprep.mubr.bf16.mxu0 0
    %618 = vmatmul.mubr.bf16.gmra.mxu0 %v572
    %v619 = vpop.f32.mrf.mxu0
    %v620 = vadd.f32 0.0, %v619
    %v621 = vpop.f32.mrf.mxu0
    %v622 = vpop.f32.mrf.mxu0
    %v623 = vadd.f32 0.0, %v622
    %v624 = vpop.f32.mrf.mxu0
    %625 = vdwg.mxu0
    %v626 = vmul.f32 %v612, 0.33333334
    %v627 = vmul.f32 %v615, 0.33333334
    %v628 = vmul.f32 %v620, 0.33333334
    %v629 = vmul.f32 %v623, 0.33333334
    %v630 = vxor.u32 %v626, 2147483648
    %v631 = vxor.u32 %v627, 2147483648
    %v632 = vxor.u32 %v628, 2147483648
    %v633 = vxor.u32 %v629, 2147483648
    %v634 = vmul.f32 %v630, 1.442695
    %v635 = vpow.pop %v634
    %v636 = vmul.f32 %v631, 1.442695
    %v637 = vpow.pop %v636
    %v638 = vmul.f32 %v632, 1.442695
    %v639 = vpow.pop %v638
    %v640 = vmul.f32 %v633, 1.442695
    %v641 = vpow.pop %v640
    %v642 = vadd.f32 %v635, 1.0
    %v643 = vadd.f32 %v637, 1.0
    %v644 = vadd.f32 %v639, 1.0
    %v645 = vadd.f32 %v641, 1.0
    %v646 = vrcp.pop %v642
    %v647 = vmul.f32 1.0, %v646
    %v648 = vrcp.pop %v643
    %v649 = vmul.f32 1.0, %v648
    %v650 = vrcp.pop %v644
    %v651 = vmul.f32 1.0, %v650
    %v652 = vrcp.pop %v645
    %v653 = vmul.f32 1.0, %v652
    %v654 = vadd.f32 %v647, %v651
    %v655 = vadd.f32 %v649, %v653
    %v656 = vmul.f32 %v654, 0.5
    %v657 = vmul.f32 %v655, 0.5
    %v658 = vxor.u32 %v656, 2147483648
    %v659 = vxor.u32 %v657, 2147483648
    %v660 = vmul.f32 %v658, 1.442695
    %v661 = vpow.pop %v660
    %v662 = vmul.f32 %v659, 1.442695
    %v663 = vpow.pop %v662
    %v664 = vadd.f32 %v661, 1.0
    %v665 = vadd.f32 %v663, 1.0
    %v666 = vrcp.pop %v664
    %v667 = vmul.f32 1.0, %v666
    %v668 = vrcp.pop %v665
    %v669 = vmul.f32 1.0, %v668
    %vm670 = vcmask 130048
    %671 = vst.msk [vmem:[#allocation5] sm:$0xff] %vm670, %v667
    %672 = vst.msk [vmem:[#allocation5 + $0x8] sm:$0xff] %vm670, %v669
    // Predicated region
    $region22: #{tpu_custom_call.1} parent=1 // pred_check
      _
    $region23: #{tpu_custom_call.1} parent=1 // pred_check_branch
      %674 = sbr.rel (0) target = $region25
    $region24: #{tpu_custom_call.1} parent=1 // pred_region
      %s676 = ssub.s32 256, 256
      %677 = vsyncadd [#allocation4], %s676
      %s678 = sshll.u32 [#allocation5], 4
      %s679 = int_to_ptr.vmem [resolvable:$true] %s678
      %684 = dma.vmem_to_hbm [thread:$0]  %s679, 256, %s4, [#allocation4], 128, 128, 8
    $region25: #{tpu_custom_call.1} parent=1 // pred_fallthru
      _
    // Predicated region
    $region26: #{tpu_custom_call.1} parent=1 // pred_check
      _
    $region27: #{tpu_custom_call.1} parent=1 // pred_check_branch
      %686 = sbr.rel (0) target = $region29
    $region28: #{tpu_custom_call.1} parent=1 // pred_region
      %687 = dma.done [#allocation4], 256
    $region29: #{tpu_custom_call.1} parent=1 // pred_fallthru
      _
    %688 = vsyncpa [#allocation3], 1
    %689 = vsyncpa [#allocation4], 1

</llo_original>
